<compile_context>
chip_gen: v7x
topology: tpu7x:2x2x1
jax: 0.10.0
libtpu: 0.0.40
codegen_flags: <defaults>
</compile_context>

<pallas_src>
import functools

import jax
import jax.numpy as jnp
from jax.experimental import pallas as pl
from jax.experimental.pallas import tpu as pltpu


def _prompt_assemble_kernel(prefix_ref, ctx_cls_ref, ctx_shared_ref, suffix_ref,
                            src_out_ref, tgt_out_ref):
    # Block shapes per grid step:
    #   prefix_ref    : (C_BLK, 1,  D)
    #   ctx_cls_ref   : (C_BLK, M1, D)
    #   ctx_shared_ref: (2,     M2, D)   row 0 = source_combined, row 1 = target
    #   suffix_ref    : (C_BLK, S,  D)
    #   *_out_ref     : (C_BLK, 1 + M1 + M2 + S, D)
    c_blk, total, D = src_out_ref.shape
    M1 = ctx_cls_ref.shape[1]
    M2 = ctx_shared_ref.shape[1]

    o1 = 1
    o2 = 1 + M1
    o3 = 1 + M1 + M2

    # Load each input segment once; reuse for both outputs.
    prefix = prefix_ref[...]
    ctx_cls = ctx_cls_ref[...]
    suffix = suffix_ref[...]
    ctx_src = jnp.broadcast_to(ctx_shared_ref[0:1, :, :], (c_blk, M2, D))
    ctx_tgt = jnp.broadcast_to(ctx_shared_ref[1:2, :, :], (c_blk, M2, D))

    # Direct per-segment stores (static slices) — no concat temporaries.
    src_out_ref[:, 0:o1, :] = prefix
    tgt_out_ref[:, 0:o1, :] = prefix
    src_out_ref[:, o1:o2, :] = ctx_cls
    tgt_out_ref[:, o1:o2, :] = ctx_cls
    src_out_ref[:, o2:o3, :] = ctx_src
    tgt_out_ref[:, o2:o3, :] = ctx_tgt
    src_out_ref[:, o3:total, :] = suffix
    tgt_out_ref[:, o3:total, :] = suffix


def _tpu_generation_info():
    """Returns (num_tensorcores, vmem_budget_bytes, vmem_limit_cap_bytes)."""
    kind = ""
    try:
        kind = jax.devices()[0].device_kind.lower()
    except Exception:
        pass
    if "v7" in kind:
        # v7x: 64 MiB VMEM / TC, 2 TCs per chip -> conservative budget.
        return 2, 36 * 1024 * 1024, 48 * 1024 * 1024
    if "v4" in kind or "v5p" in kind:
        # Megacore generations: 2 TCs, 128 MiB VMEM.
        return 2, 64 * 1024 * 1024, 96 * 1024 * 1024
    if "v5" in kind or "v6" in kind:
        # v5e / v6e: single TC, 128 MiB VMEM -> one big block, large DMAs.
        return 1, 64 * 1024 * 1024, 96 * 1024 * 1024
    # Unknown generation: safe everywhere.
    return 1, 32 * 1024 * 1024, 48 * 1024 * 1024


def _choose_class_block(n_cls, M1, M2, S, D, dtype, num_cores, budget_bytes):
    """Classes per grid step, sized to the VMEM budget; split only if >=2 TCs."""
    itemsize = jnp.dtype(dtype).itemsize
    total = 1 + M1 + M2 + S
    in_tokens = 1 + M1 + S
    # Double-buffered BlockSpec buffers (per-class inputs + both outputs), plus
    # headroom for the in-body loaded/broadcast copies of the input segments.
    per_class = (2 * (in_tokens + 2 * total) + (in_tokens + 2 * M2)) * D * itemsize
    const = 2 * (2 * M2) * D * itemsize  # shared-ctx block (double-buffered)
    c_blk = max(1, int((budget_bytes - const) // max(per_class, 1)))
    c_blk = min(c_blk, n_cls)
    if num_cores >= 2 and n_cls >= 2:
        # Give each TensorCore at least one block (balanced halves on v7x).
        c_blk = min(c_blk, -(-n_cls // num_cores))
    # Re-balance so the last block is not a tiny remainder.
    steps = -(-n_cls // c_blk)
    c_blk = -(-n_cls // steps)
    live_bytes = const + c_blk * per_class
    return int(c_blk), int(live_bytes)


def _prompt_forward_xla(prefix, ctx_cls, ctx_source_combined, ctx_target, suffix):
    """Plain-XLA fallback for tiny problem sizes (kernel overhead dominates)."""
    n_cls = prefix.shape[0]
    M2, D = ctx_target.shape[1], ctx_target.shape[2]
    src = jnp.concatenate(
        [prefix, ctx_cls, jnp.broadcast_to(ctx_source_combined, (n_cls, M2, D)),
         suffix], axis=1)
    tgt = jnp.concatenate(
        [prefix, ctx_cls, jnp.broadcast_to(ctx_target, (n_cls, M2, D)),
         suffix], axis=1)
    return src, tgt


def prompt_generator_forward(prefix, ctx_cls, ctx_source_combined, ctx_target,
                             suffix, *, force_pallas=False):
    """Pallas equivalent of PromptGenerator.forward().

    Args:
      prefix:              [n_cls, 1,  D]  (token_prefix buffer)
      ctx_cls:             [n_cls, M1, D]  (per-class learnable ctx)
      ctx_source_combined: [1,     M2, D]  (shared learnable ctx)
      ctx_target:          [1,     M2, D]  (shared learnable ctx)
      suffix:              [n_cls, S,  D]  (token_suffix buffer)

    Returns:
      (source_combined_prompts, target_prompts), each [n_cls, 1+M1+M2+S, D]
      — same order as the PyTorch module.
    """
    n_cls, _, D = prefix.shape
    M1 = ctx_cls.shape[1]
    M2 = ctx_target.shape[1]
    assert ctx_source_combined.shape[1] == M2, (
        "ctx_source_combined and ctx_target must have the same M2")
    S = suffix.shape[1]
    total = 1 + M1 + M2 + S

    # torch.cat promotes mixed dtypes; do the same explicitly here.
    dtype = jnp.result_type(prefix.dtype, ctx_cls.dtype,
                            ctx_source_combined.dtype, ctx_target.dtype,
                            suffix.dtype)
    prefix = prefix.astype(dtype)
    ctx_cls = ctx_cls.astype(dtype)
    ctx_source_combined = ctx_source_combined.astype(dtype)
    ctx_target = ctx_target.astype(dtype)
    suffix = suffix.astype(dtype)

    itemsize = jnp.dtype(dtype).itemsize
    out_bytes = 2 * n_cls * total * D * itemsize
    if not force_pallas and out_bytes < (1 << 20):
        # µs-scale problem: pallas_call fixed overhead dominates; use plain XLA.
        return _prompt_forward_xla(prefix, ctx_cls, ctx_source_combined,
                                   ctx_target, suffix)

    num_cores, budget_bytes, vmem_cap = _tpu_generation_info()
    c_blk, live_bytes = _choose_class_block(
        n_cls, M1, M2, S, D, dtype, num_cores, budget_bytes)
    grid = (pl.cdiv(n_cls, c_blk),)

    # vmem limit derived from actual block bytes + 50% headroom, per-gen cap.
    vmem_limit = int(min(vmem_cap, max((live_bytes * 3) // 2, 8 * 1024 * 1024)))

    # Stack the two shared ctx vectors into one broadcast input: fetched once,
    # resident across all grid steps (constant block index).
    ctx_shared = jnp.concatenate([ctx_source_combined, ctx_target], axis=0)

    out_shape = (
        jax.ShapeDtypeStruct((n_cls, total, D), dtype),  # source_combined
        jax.ShapeDtypeStruct((n_cls, total, D), dtype),  # target
    )

    grid_spec = pltpu.PrefetchScalarGridSpec(
        num_scalar_prefetch=0,
        grid=grid,
        in_specs=[
            pl.BlockSpec((c_blk, 1, D), lambda i: (i, 0, 0)),    # prefix
            pl.BlockSpec((c_blk, M1, D), lambda i: (i, 0, 0)),   # ctx_cls
            pl.BlockSpec((2, M2, D), lambda i: (0, 0, 0)),       # shared ctx (resident)
            pl.BlockSpec((c_blk, S, D), lambda i: (i, 0, 0)),    # suffix
        ],
        out_specs=[
            pl.BlockSpec((c_blk, total, D), lambda i: (i, 0, 0)),
            pl.BlockSpec((c_blk, total, D), lambda i: (i, 0, 0)),
        ],
    )

    src_prompts, tgt_prompts = pl.pallas_call(
        _prompt_assemble_kernel,
        out_shape=out_shape,
        grid_spec=grid_spec,
        compiler_params=pltpu.CompilerParams(
            dimension_semantics=("parallel",),
            vmem_limit_bytes=vmem_limit),
    )(prefix, ctx_cls, ctx_shared, suffix)

    return src_prompts, tgt_prompts


if __name__ == "__main__":
    # Small, forward-consistent shapes: n_cls classes, M1 per-class ctx tokens,
    # M2 shared ctx tokens, suffix length S, embedding_dim D.
    n_cls, M1, M2, S, D = 4, 4, 4, 8, 128
    dtype = jnp.float32

    key = jax.random.PRNGKey(0)
    k_prefix, k_suffix, k_cls, k_tgt, k_src = jax.random.split(key, 5)

    # Deterministic "parameters" / buffers (module inits ctx_* with std=0.02;
    # prefix/suffix come from frozen CLIP token embeddings in the original).
    token_prefix = jax.random.normal(k_prefix, (n_cls, 1, D), dtype)
    token_suffix = jax.random.normal(k_suffix, (n_cls, S, D), dtype)
    ctx_cls = 0.02 * jax.random.normal(k_cls, (n_cls, M1, D), dtype)
    ctx_target = 0.02 * jax.random.normal(k_tgt, (1, M2, D), dtype)
    ctx_source_combined = 0.02 * jax.random.normal(k_src, (1, M2, D), dtype)

    # Force the Pallas path so the kernel is exercised even at this toy size.
    fwd_pallas = jax.jit(functools.partial(prompt_generator_forward,
                                           force_pallas=True))
    src_prompts, tgt_prompts = fwd_pallas(
        token_prefix, ctx_cls, ctx_source_combined, ctx_target, token_suffix)
    jax.block_until_ready((src_prompts, tgt_prompts))

    # Auto-dispatch path (takes the XLA fallback at this size).
    src_auto, tgt_auto = jax.jit(prompt_generator_forward)(
        token_prefix, ctx_cls, ctx_source_combined, ctx_target, token_suffix)
    jax.block_until_ready((src_auto, tgt_auto))

    # Pure-JAX reference (mirrors the torch.cat forward).
    ref_tgt = jnp.concatenate(
        [token_prefix, ctx_cls,
         jnp.broadcast_to(ctx_target, (n_cls, M2, D)), token_suffix], axis=1)
    ref_src = jnp.concatenate(
        [token_prefix, ctx_cls,
         jnp.broadcast_to(ctx_source_combined, (n_cls, M2, D)), token_suffix],
        axis=1)

    assert src_prompts.shape == (n_cls, 1 + M1 + M2 + S, D)
    assert tgt_prompts.shape == (n_cls, 1 + M1 + M2 + S, D)
    assert jnp.allclose(src_prompts, ref_src)
    assert jnp.allclose(tgt_prompts, ref_tgt)
    assert jnp.allclose(src_auto, ref_src)
    assert jnp.allclose(tgt_auto, ref_tgt)

    print("KERNEL_OK")
</pallas_src>

<mosaic_0001>
module attributes {stable_mosaic.version = 11 : i64} {
  func.func @_prompt_assemble_kernel(%arg0: i32, %arg1: memref<4x1x128xf32, #tpu.memory_space<vmem>>, %arg2: memref<4x4x128xf32, #tpu.memory_space<vmem>>, %arg3: memref<2x4x128xf32, #tpu.memory_space<vmem>>, %arg4: memref<4x8x128xf32, #tpu.memory_space<vmem>>, %arg5: memref<4x17x128xf32, #tpu.memory_space<vmem>>, %arg6: memref<4x17x128xf32, #tpu.memory_space<vmem>>) attributes {dimension_semantics = [#tpu.dimension_semantics<parallel>], iteration_bounds = array<i64: 1>, scalar_prefetch = 0 : i64, scratch_operands = 0 : i64, tpu.core_type = #tpu.core_type<tc>, window_params = [{transform_indices = @transform_0, window_bounds = array<i64: 4, 1, 128>}, {transform_indices = @transform_1, window_bounds = array<i64: 4, 4, 128>}, {pipeline_mode = #tpu.pipeline_mode<synchronous>, transform_indices = @transform_2, window_bounds = array<i64: 2, 4, 128>}, {transform_indices = @transform_3, window_bounds = array<i64: 4, 8, 128>}, {transform_indices = @transform_4, window_bounds = array<i64: 4, 17, 128>}, {transform_indices = @transform_5, window_bounds = array<i64: 4, 17, 128>}]} {
    %c0 = arith.constant 0 : index
    %c0_0 = arith.constant 0 : index
    %c0_1 = arith.constant 0 : index
    %0 = vector.load %arg1[%c0, %c0_0, %c0_1] : memref<4x1x128xf32, #tpu.memory_space<vmem>>, vector<4x1x128xf32>
    %c0_2 = arith.constant 0 : index
    %c0_3 = arith.constant 0 : index
    %c0_4 = arith.constant 0 : index
    %1 = vector.load %arg2[%c0_2, %c0_3, %c0_4] : memref<4x4x128xf32, #tpu.memory_space<vmem>>, vector<4x4x128xf32>
    %c0_5 = arith.constant 0 : index
    %c0_6 = arith.constant 0 : index
    %c0_7 = arith.constant 0 : index
    %2 = vector.load %arg4[%c0_5, %c0_6, %c0_7] : memref<4x8x128xf32, #tpu.memory_space<vmem>>, vector<4x8x128xf32>
    %c0_8 = arith.constant 0 : index
    %c0_9 = arith.constant 0 : index
    %c0_10 = arith.constant 0 : index
    %3 = vector.load %arg3[%c0_8, %c0_9, %c0_10] : memref<2x4x128xf32, #tpu.memory_space<vmem>>, vector<1x4x128xf32>
    %4 = vector.shape_cast %3 : vector<1x4x128xf32> to vector<1x4x128xf32>
    %5 = vector.broadcast %4 : vector<1x4x128xf32> to vector<4x4x128xf32>
    %c1 = arith.constant 1 : index
    %c0_11 = arith.constant 0 : index
    %c0_12 = arith.constant 0 : index
    %6 = vector.load %arg3[%c1, %c0_11, %c0_12] : memref<2x4x128xf32, #tpu.memory_space<vmem>>, vector<1x4x128xf32>
    %7 = vector.shape_cast %6 : vector<1x4x128xf32> to vector<1x4x128xf32>
    %8 = vector.broadcast %7 : vector<1x4x128xf32> to vector<4x4x128xf32>
    %c0_13 = arith.constant 0 : index
    %c0_14 = arith.constant 0 : index
    %c0_15 = arith.constant 0 : index
    %9 = vector.load %arg5[%c0_13, %c0_14, %c0_15] : memref<4x17x128xf32, #tpu.memory_space<vmem>>, vector<4x1x128xf32>
    tpu.vector_store %arg5[%c0_13, %c0_14, %c0_15], %0 {strides = array<i32>} : memref<4x17x128xf32, #tpu.memory_space<vmem>>, vector<4x1x128xf32>,
    %c0_16 = arith.constant 0 : index
    %c0_17 = arith.constant 0 : index
    %c0_18 = arith.constant 0 : index
    %10 = vector.load %arg6[%c0_16, %c0_17, %c0_18] : memref<4x17x128xf32, #tpu.memory_space<vmem>>, vector<4x1x128xf32>
    tpu.vector_store %arg6[%c0_16, %c0_17, %c0_18], %0 {strides = array<i32>} : memref<4x17x128xf32, #tpu.memory_space<vmem>>, vector<4x1x128xf32>,
    %c0_19 = arith.constant 0 : index
    %c1_20 = arith.constant 1 : index
    %c0_21 = arith.constant 0 : index
    %11 = vector.load %arg5[%c0_19, %c1_20, %c0_21] : memref<4x17x128xf32, #tpu.memory_space<vmem>>, vector<4x4x128xf32>
    tpu.vector_store %arg5[%c0_19, %c1_20, %c0_21], %1 {strides = array<i32>} : memref<4x17x128xf32, #tpu.memory_space<vmem>>, vector<4x4x128xf32>,
    %c0_22 = arith.constant 0 : index
    %c1_23 = arith.constant 1 : index
    %c0_24 = arith.constant 0 : index
    %12 = vector.load %arg6[%c0_22, %c1_23, %c0_24] : memref<4x17x128xf32, #tpu.memory_space<vmem>>, vector<4x4x128xf32>
    tpu.vector_store %arg6[%c0_22, %c1_23, %c0_24], %1 {strides = array<i32>} : memref<4x17x128xf32, #tpu.memory_space<vmem>>, vector<4x4x128xf32>,
    %c0_25 = arith.constant 0 : index
    %c5 = arith.constant 5 : index
    %c0_26 = arith.constant 0 : index
    %13 = vector.load %arg5[%c0_25, %c5, %c0_26] : memref<4x17x128xf32, #tpu.memory_space<vmem>>, vector<4x4x128xf32>
    tpu.vector_store %arg5[%c0_25, %c5, %c0_26], %5 {strides = array<i32>} : memref<4x17x128xf32, #tpu.memory_space<vmem>>, vector<4x4x128xf32>,
    %c0_27 = arith.constant 0 : index
    %c5_28 = arith.constant 5 : index
    %c0_29 = arith.constant 0 : index
    %14 = vector.load %arg6[%c0_27, %c5_28, %c0_29] : memref<4x17x128xf32, #tpu.memory_space<vmem>>, vector<4x4x128xf32>
    tpu.vector_store %arg6[%c0_27, %c5_28, %c0_29], %8 {strides = array<i32>} : memref<4x17x128xf32, #tpu.memory_space<vmem>>, vector<4x4x128xf32>,
    %c0_30 = arith.constant 0 : index
    %c9 = arith.constant 9 : index
    %c0_31 = arith.constant 0 : index
    %15 = vector.load %arg5[%c0_30, %c9, %c0_31] : memref<4x17x128xf32, #tpu.memory_space<vmem>>, vector<4x8x128xf32>
    tpu.vector_store %arg5[%c0_30, %c9, %c0_31], %2 {strides = array<i32>} : memref<4x17x128xf32, #tpu.memory_space<vmem>>, vector<4x8x128xf32>,
    %c0_32 = arith.constant 0 : index
    %c9_33 = arith.constant 9 : index
    %c0_34 = arith.constant 0 : index
    %16 = vector.load %arg6[%c0_32, %c9_33, %c0_34] : memref<4x17x128xf32, #tpu.memory_space<vmem>>, vector<4x8x128xf32>
    tpu.vector_store %arg6[%c0_32, %c9_33, %c0_34], %2 {strides = array<i32>} : memref<4x17x128xf32, #tpu.memory_space<vmem>>, vector<4x8x128xf32>,
    return
  }
  func.func @transform_0(%arg0: i32) -> (i32, i32, i32) {
    %c0_i32 = arith.constant 0 : i32
    %c0_i32_0 = arith.constant 0 : i32
    %c0_i32_1 = arith.constant 0 : i32
    return %arg0, %c0_i32, %c0_i32_0 : i32, i32, i32
  }
  func.func @transform_1(%arg0: i32) -> (i32, i32, i32) {
    %c0_i32 = arith.constant 0 : i32
    %c0_i32_0 = arith.constant 0 : i32
    %c0_i32_1 = arith.constant 0 : i32
    return %arg0, %c0_i32, %c0_i32_0 : i32, i32, i32
  }
  func.func @transform_2(%arg0: i32) -> (i32, i32, i32) {
    %c0_i32 = arith.constant 0 : i32
    %c0_i32_0 = arith.constant 0 : i32
    %c0_i32_1 = arith.constant 0 : i32
    %c0_i32_2 = arith.constant 0 : i32
    return %c0_i32, %c0_i32_0, %c0_i32_1 : i32, i32, i32
  }
  func.func @transform_3(%arg0: i32) -> (i32, i32, i32) {
    %c0_i32 = arith.constant 0 : i32
    %c0_i32_0 = arith.constant 0 : i32
    %c0_i32_1 = arith.constant 0 : i32
    return %arg0, %c0_i32, %c0_i32_0 : i32, i32, i32
  }
  func.func @transform_4(%arg0: i32) -> (i32, i32, i32) {
    %c0_i32 = arith.constant 0 : i32
    %c0_i32_0 = arith.constant 0 : i32
    %c0_i32_1 = arith.constant 0 : i32
    return %arg0, %c0_i32, %c0_i32_0 : i32, i32, i32
  }
  func.func @transform_5(%arg0: i32) -> (i32, i32, i32) {
    %c0_i32 = arith.constant 0 : i32
    %c0_i32_0 = arith.constant 0 : i32
    %c0_i32_1 = arith.constant 0 : i32
    return %arg0, %c0_i32, %c0_i32_0 : i32, i32, i32
  }
}

</mosaic_0001>

<llo_original>
// kernel: prompt_generator_forward.1
$region0: #{prompt_generator_forward.1}
  #allocation0 [shape = 'u32[]', space=smem, size = 0x4, offset = 0x4, fixed_abs, tag = 'smem constant byte address 0x4 - core index']
  #allocation1 [shape = 'u32[144,128]{1,0:T(1,128)}', space=vmem, size = 0x12000, scoped, tag = 'internal scratch']
  %s0 = inlined_call_operand.hbm [shape: f32[4,1,128], index: 0, kind: input, shape index: {}]
  %s1 = inlined_call_operand.vmem [shape: f32[4,4,128], index: 1, kind: input, shape index: {}]
  %s2 = inlined_call_operand.vmem [shape: f32[2,4,128], index: 2, kind: input, shape index: {}]
  %s3 = inlined_call_operand.hbm [shape: f32[4,8,128], index: 3, kind: input, shape index: {}]
  %s4 = inlined_call_operand.vmem [shape: f32[4,17,128], index: 4, kind: output, shape index: {0}]
  %s5 = inlined_call_operand.vmem [shape: f32[4,17,128], index: 5, kind: output, shape index: {1}]
  %6 = xla_tuple %s4, %s5
  %s7 = sld [smem:[#allocation0]]
  $region42: #{prompt_generator_forward.1} parent=0
    _
  %s9 = ssub.s32 1, %s7
  %s10 = scalar_select 0, %s9, %s7
  $region1: #{prompt_generator_forward.1} parent=0
    #allocation2 [shape = 'u8[2048]{0}', space=vmem, size = 0x800, scoped, tag = 'input window, operand 0, single buffered']
    #allocation3 [shape = 's32[1]{0}', space=sflag, size = 0x4, scoped, tag = 'scoped memory for prompt_generator_forward.1']
    #allocation4 [shape = 'u8[16384]{0}', space=vmem, size = 0x4000, scoped, tag = 'input window, operand 3, single buffered']
    #allocation5 [shape = 's32[1]{0}', space=sflag, size = 0x4, scoped, tag = 'scoped memory for prompt_generator_forward.1']
    %11 = vsyncpa [#allocation3], 0
    %12 = vsyncpa [#allocation5], 0
    // Predicated region
    $region2: #{prompt_generator_forward.1} parent=1 // pred_check
      _
    $region3: #{prompt_generator_forward.1} parent=1 // pred_check_branch
      %14 = sbr.rel (0) target = $region5
    $region4: #{prompt_generator_forward.1} parent=1 // pred_region
      %s16 = ssub.s32 64, 64
      %17 = vsyncadd [#allocation3], %s16
      %s18 = sshll.u32 [#allocation2], 4
      %s19 = int_to_ptr.vmem [resolvable:$true] %s18
      %24 = dma.hbm_to_vmem [thread:$0]  %s0, 64, %s19, [#allocation3], 16, 16, 1
    $region5: #{prompt_generator_forward.1} parent=1 // pred_fallthru
      _
    // Predicated region
    $region6: #{prompt_generator_forward.1} parent=1 // pred_check
      _
    $region7: #{prompt_generator_forward.1} parent=1 // pred_check_branch
      %26 = sbr.rel (0) target = $region9
    $region8: #{prompt_generator_forward.1} parent=1 // pred_region
      _
    $region9: #{prompt_generator_forward.1} parent=1 // pred_fallthru
      _
    // Predicated region
    $region10: #{prompt_generator_forward.1} parent=1 // pred_check
      _
    $region11: #{prompt_generator_forward.1} parent=1 // pred_check_branch
      %28 = sbr.rel (0) target = $region13
    $region12: #{prompt_generator_forward.1} parent=1 // pred_region
      _
    $region13: #{prompt_generator_forward.1} parent=1 // pred_fallthru
      _
    // Predicated region
    $region14: #{prompt_generator_forward.1} parent=1 // pred_check
      _
    $region15: #{prompt_generator_forward.1} parent=1 // pred_check_branch
      %30 = sbr.rel (0) target = $region17
    $region16: #{prompt_generator_forward.1} parent=1 // pred_region
      %s32 = ssub.s32 512, 512
      %33 = vsyncadd [#allocation5], %s32
      %s34 = sshll.u32 [#allocation4], 4
      %s35 = int_to_ptr.vmem [resolvable:$true] %s34
      %40 = dma.hbm_to_vmem [thread:$0]  %s3, 512, %s35, [#allocation5], 128, 128, 8
    $region17: #{prompt_generator_forward.1} parent=1 // pred_fallthru
      _
    // Predicated region
    $region18: #{prompt_generator_forward.1} parent=1 // pred_check
      _
    $region19: #{prompt_generator_forward.1} parent=1 // pred_check_branch
      %42 = sbr.rel (0) target = $region21
    $region20: #{prompt_generator_forward.1} parent=1 // pred_region
      %43 = dma.done [#allocation3], 64
    $region21: #{prompt_generator_forward.1} parent=1 // pred_fallthru
      _
    // Predicated region
    $region22: #{prompt_generator_forward.1} parent=1 // pred_check
      _
    $region23: #{prompt_generator_forward.1} parent=1 // pred_check_branch
      %45 = sbr.rel (0) target = $region25
    $region24: #{prompt_generator_forward.1} parent=1 // pred_region
      %46 = dma.done [#allocation5], 512
    $region25: #{prompt_generator_forward.1} parent=1 // pred_fallthru
      _
    %v47 = vld [vmem:[#allocation2] sm:$0x1]
    %v48 = vld [vmem:[#allocation2 + $0x1] sm:$0x1]
    %v49 = vld [vmem:[#allocation2 + $0x2] sm:$0x1]
    %v50 = vld [vmem:[#allocation2 + $0x3] sm:$0x1]
    %v51 = vld [vmem:[%s1] sm:$0xf]
    %v52 = vld [vmem:[%s1 + $0x4] sm:$0xf]
    %v53 = vld [vmem:[%s1 + $0x8] sm:$0xf]
    %v54 = vld [vmem:[%s1 + $0xc] sm:$0xf]
    %v55 = vld [vmem:[#allocation4] sm:$0xff]
    %v56 = vld [vmem:[#allocation4 + $0x8] sm:$0xff]
    %v57 = vld [vmem:[#allocation4 + $0x10] sm:$0xff]
    %v58 = vld [vmem:[#allocation4 + $0x18] sm:$0xff]
    %v59 = vld [vmem:[%s2] sm:$0xf]
    %s60 = scalar_lea.vmem %s2, 4
    %v61 = vld [vmem:[%s60] sm:$0xf]
    %62 = vst [vmem:[%s4] sm:$0x1] %v47
    %63 = vst [vmem:[%s4 + $0x18] sm:$0x1] %v48
    %64 = vst [vmem:[%s4 + $0x30] sm:$0x1] %v49
    %65 = vst [vmem:[%s4 + $0x48] sm:$0x1] %v50
    %66 = vst [vmem:[%s5] sm:$0x1] %v47
    %67 = vst [vmem:[%s5 + $0x18] sm:$0x1] %v48
    %68 = vst [vmem:[%s5 + $0x30] sm:$0x1] %v49
    %69 = vst [vmem:[%s5 + $0x48] sm:$0x1] %v50
    %70 = vst [vmem:[%s4 + $0x1] sm:$0xf] %v51
    %71 = vst [vmem:[%s4 + $0x19] sm:$0xf] %v52
    %72 = vst [vmem:[%s4 + $0x31] sm:$0xf] %v53
    %73 = vst [vmem:[%s4 + $0x49] sm:$0xf] %v54
    %74 = vst [vmem:[%s5 + $0x1] sm:$0xf] %v51
    %75 = vst [vmem:[%s5 + $0x19] sm:$0xf] %v52
    %76 = vst [vmem:[%s5 + $0x31] sm:$0xf] %v53
    %77 = vst [vmem:[%s5 + $0x49] sm:$0xf] %v54
    %78 = vst [vmem:[%s4 + $0x5] sm:$0xf] %v59
    %79 = vst [vmem:[%s4 + $0x1d] sm:$0xf] %v59
    %80 = vst [vmem:[%s4 + $0x35] sm:$0xf] %v59
    %81 = vst [vmem:[%s4 + $0x4d] sm:$0xf] %v59
    %82 = vst [vmem:[%s5 + $0x5] sm:$0xf] %v61
    %83 = vst [vmem:[%s5 + $0x1d] sm:$0xf] %v61
    %84 = vst [vmem:[%s5 + $0x35] sm:$0xf] %v61
    %85 = vst [vmem:[%s5 + $0x4d] sm:$0xf] %v61
    %86 = vst [vmem:[%s4 + $0x9] sm:$0xff] %v55
    %87 = vst [vmem:[%s4 + $0x21] sm:$0xff] %v56
    %88 = vst [vmem:[%s4 + $0x39] sm:$0xff] %v57
    %89 = vst [vmem:[%s4 + $0x51] sm:$0xff] %v58
    %90 = vst [vmem:[%s5 + $0x9] sm:$0xff] %v55
    %91 = vst [vmem:[%s5 + $0x21] sm:$0xff] %v56
    %92 = vst [vmem:[%s5 + $0x39] sm:$0xff] %v57
    %93 = vst [vmem:[%s5 + $0x51] sm:$0xff] %v58
    // Predicated region
    $region26: #{prompt_generator_forward.1} parent=1 // pred_check
      _
    $region27: #{prompt_generator_forward.1} parent=1 // pred_check_branch
      %95 = sbr.rel (0) target = $region29
    $region28: #{prompt_generator_forward.1} parent=1 // pred_region
      _
    $region29: #{prompt_generator_forward.1} parent=1 // pred_fallthru
      _
    // Predicated region
    $region30: #{prompt_generator_forward.1} parent=1 // pred_check
      _
    $region31: #{prompt_generator_forward.1} parent=1 // pred_check_branch
      %97 = sbr.rel (0) target = $region33
    $region32: #{prompt_generator_forward.1} parent=1 // pred_region
      _
    $region33: #{prompt_generator_forward.1} parent=1 // pred_fallthru
      _
    // Predicated region
    $region34: #{prompt_generator_forward.1} parent=1 // pred_check
      _
    $region35: #{prompt_generator_forward.1} parent=1 // pred_check_branch
      %99 = sbr.rel (0) target = $region37
    $region36: #{prompt_generator_forward.1} parent=1 // pred_region
      _
    $region37: #{prompt_generator_forward.1} parent=1 // pred_fallthru
      _
    // Predicated region
    $region38: #{prompt_generator_forward.1} parent=1 // pred_check
      _
    $region39: #{prompt_generator_forward.1} parent=1 // pred_check_branch
      %101 = sbr.rel (0) target = $region41
    $region40: #{prompt_generator_forward.1} parent=1 // pred_region
      _
    $region41: #{prompt_generator_forward.1} parent=1 // pred_fallthru
      _
    %102 = vsyncpa [#allocation3], 1
    %103 = vsyncpa [#allocation5], 1

</llo_original>
